<compile_context>
chip_gen: v7x
topology: tpu7x:2x2x1
jax: 0.10.0
libtpu: 0.0.40
codegen_flags: <defaults>
</compile_context>

<pallas_src>
import jax
import jax.numpy as jnp
from jax.experimental import pallas as pl
from jax.experimental.pallas import tpu as pltpu

# ---------------- model hyper-parameters (small, consistent with forward) ----
B = 8                 # batch
DIM_INPUT = 4         # number of categorical fields
NUM_EMBEDDING = 50    # vocab size
DIM_EMBEDDING = 32
DIM_FEATURE = DIM_INPUT * DIM_EMBEDDING   # 128
DIM_HIDDEN_1 = 64
DIM_HIDDEN_2 = 64
DIM_HIDDEN_CAT = DIM_HIDDEN_1 + DIM_HIDDEN_2   # 128 (lane-full)
NUM_HEADS = 1         # Aggregation implemented for num_heads == 1
BN_EPS = 1e-5

# rows of the packed (8, DIM_HIDDEN_CAT) parameter slab
ROW_BA = 0      # concat(b1a, b2a)
ROW_GAMMA = 1   # concat(bn1_gamma, bn2_gamma)
ROW_BETA = 2    # concat(bn1_beta, bn2_beta)
ROW_BB = 3      # concat(b1b, b2b)
ROW_W1ST = 4    # concat(agg_w1.T, agg_w2.T)  (first-order aggregation weights)
ROW_BIAS = 5    # agg_bias at column 0


# ---------------------------- Pallas kernel ---------------------------------
def finalmlp_kernel(emb_ref, wa_ref, wb_ref, wbil_ref, slab_ref, out_ref):
    emb = emb_ref[...]                                   # (B, 128)

    # Fused layer A of both towers; feature-selection gates are pre-folded
    # into wa_ref rows, so no in-kernel gate matmuls / sigmoids / elementwise
    # gating passes are needed.
    h = jnp.dot(emb, wa_ref[...],
                preferred_element_type=jnp.float32) + slab_ref[ROW_BA:ROW_BA + 1, :]

    # BatchNorm1d (training mode: per-column batch statistics, biased
    # variance) over the concatenated (B, 128) activation — one reduce for
    # both towers.
    # TODO(synk): if the batch axis is ever tiled via the grid, BN stats need
    # a cross-tile two-pass reduction (or inference-mode running stats).
    mean = jnp.mean(h, axis=0, keepdims=True)
    var = jnp.mean((h - mean) ** 2, axis=0, keepdims=True)
    h = (h - mean) * jax.lax.rsqrt(var + BN_EPS)
    h = h * slab_ref[ROW_GAMMA:ROW_GAMMA + 1, :] + slab_ref[ROW_BETA:ROW_BETA + 1, :]
    h = jnp.maximum(h, 0.0)                              # ReLU; Dropout(0.0) == id

    # Fused layer B (block-diagonal weights): lat = [lat1 | lat2], (B, 128)
    lat = jnp.dot(h, wb_ref[...],
                  preferred_element_type=jnp.float32) + slab_ref[ROW_BB:ROW_BB + 1, :]

    # Aggregation (num_heads == 1), single MXU push:
    #   wbil has W12 in its [:H1, H1:] block and zeros elsewhere, so
    #   q[:, H1:] = lat1 @ W12 and q[:, :H1] = 0.
    q = jnp.dot(lat, wbil_ref[...], preferred_element_type=jnp.float32)
    contrib = (q + slab_ref[ROW_W1ST:ROW_W1ST + 1, :]) * lat
    # sum over lanes = sum((lat1@W12) * lat2) + lat1@agg_w1 + lat2@agg_w2
    logits = jnp.sum(contrib, axis=-1, keepdims=True) \
        + slab_ref[ROW_BIAS:ROW_BIAS + 1, 0:1]
    out_ref[...] = jax.nn.sigmoid(logits)


# ----------------- parameter-only algebraic folds (cacheable) ----------------
def prepare_kernel_params(p):
    """Fold gates into layer-A weights, fuse towers, pack small params.

    Depends only on parameters (not on the batch), so in a serving setting
    this is computed once and cached.
    """
    # FeatureSelection gate vectors (each (1, DIM_FEATURE))
    gate1 = 2.0 * jax.nn.sigmoid(p["gate1_bias"] @ p["gate1_w"] + p["gate1_b"])
    gate2 = 2.0 * jax.nn.sigmoid(p["gate2_bias"] @ p["gate2_w"] + p["gate2_b"])

    # Layer A: (gate * emb) @ W == emb @ (gate.T * W); concat both towers.
    wa = jnp.concatenate([gate1.T * p["w1a"], gate2.T * p["w2a"]],
                         axis=1).astype(jnp.float32)            # (F, H1+H2)

    # Layer B: block-diagonal so one matmul produces [lat1 | lat2].
    wb = jnp.zeros((DIM_HIDDEN_CAT, DIM_HIDDEN_CAT), jnp.float32)
    wb = wb.at[:DIM_HIDDEN_1, :DIM_HIDDEN_1].set(p["w1b"])
    wb = wb.at[DIM_HIDDEN_1:, DIM_HIDDEN_1:].set(p["w2b"])

    # Bilinear aggregation weight, padded so lat_cat @ wbil puts lat1@W12
    # into the lat2 columns.
    wbil = jnp.zeros((DIM_HIDDEN_CAT, DIM_HIDDEN_CAT), jnp.float32)
    wbil = wbil.at[:DIM_HIDDEN_1, DIM_HIDDEN_1:].set(p["agg_w12"])

    # Packed (8, 128) slab of all small parameter vectors (one DMA).
    slab = jnp.zeros((8, DIM_HIDDEN_CAT), jnp.float32)
    slab = slab.at[ROW_BA].set(
        jnp.concatenate([p["b1a"], p["b2a"]], axis=1)[0])
    slab = slab.at[ROW_GAMMA].set(
        jnp.concatenate([p["bn1_gamma"], p["bn2_gamma"]], axis=1)[0])
    slab = slab.at[ROW_BETA].set(
        jnp.concatenate([p["bn1_beta"], p["bn2_beta"]], axis=1)[0])
    slab = slab.at[ROW_BB].set(
        jnp.concatenate([p["b1b"], p["b2b"]], axis=1)[0])
    slab = slab.at[ROW_W1ST].set(
        jnp.concatenate([p["agg_w1"].T, p["agg_w2"].T], axis=1)[0])
    slab = slab.at[ROW_BIAS, 0].set(p["agg_bias"][0, 0])
    return wa, wb, wbil, slab


def finalmlp_forward(emb_flat, wa, wb, wbil, slab):
    """emb_flat: (B, DIM_FEATURE) float32 gathered embeddings."""
    vmem = pl.BlockSpec(memory_space=pltpu.MemorySpace.VMEM)
    return pl.pallas_call(
        finalmlp_kernel,
        in_specs=[vmem, vmem, vmem, vmem, vmem],
        out_specs=vmem,
        out_shape=jax.ShapeDtypeStruct((B, 1), jnp.float32),
    )(emb_flat, wa, wb, wbil, slab)


# ---------------------------- parameter init ---------------------------------
def xavier_uniform(key, shape, fan_in, fan_out):
    limit = (6.0 / (fan_in + fan_out)) ** 0.5
    return jax.random.uniform(key, shape, jnp.float32, -limit, limit)


def init_params(key):
    ks = jax.random.split(key, 16)
    p = {}
    # embedding table
    p["emb_table"] = jax.random.normal(ks[0], (NUM_EMBEDDING, DIM_EMBEDDING),
                                       jnp.float32) * 0.1
    # FeatureSelection gates: Linear(DIM_INPUT -> DIM_FEATURE), bias ones(1,DIM_INPUT)
    p["gate1_bias"] = jnp.ones((1, DIM_INPUT), jnp.float32)
    p["gate1_w"] = xavier_uniform(ks[1], (DIM_INPUT, DIM_FEATURE), DIM_INPUT, DIM_FEATURE)
    p["gate1_b"] = jnp.zeros((1, DIM_FEATURE), jnp.float32)
    p["gate2_bias"] = jnp.ones((1, DIM_INPUT), jnp.float32)
    p["gate2_w"] = xavier_uniform(ks[2], (DIM_INPUT, DIM_FEATURE), DIM_INPUT, DIM_FEATURE)
    p["gate2_b"] = jnp.zeros((1, DIM_FEATURE), jnp.float32)
    # Tower 1: Linear(F->H1) + BN + ReLU + Linear(H1->H1)
    p["w1a"] = xavier_uniform(ks[3], (DIM_FEATURE, DIM_HIDDEN_1), DIM_FEATURE, DIM_HIDDEN_1)
    p["b1a"] = jnp.zeros((1, DIM_HIDDEN_1), jnp.float32)
    p["bn1_gamma"] = jnp.ones((1, DIM_HIDDEN_1), jnp.float32)
    p["bn1_beta"] = jnp.zeros((1, DIM_HIDDEN_1), jnp.float32)
    p["w1b"] = xavier_uniform(ks[4], (DIM_HIDDEN_1, DIM_HIDDEN_1), DIM_HIDDEN_1, DIM_HIDDEN_1)
    p["b1b"] = jnp.zeros((1, DIM_HIDDEN_1), jnp.float32)
    # Tower 2
    p["w2a"] = xavier_uniform(ks[5], (DIM_FEATURE, DIM_HIDDEN_2), DIM_FEATURE, DIM_HIDDEN_2)
    p["b2a"] = jnp.zeros((1, DIM_HIDDEN_2), jnp.float32)
    p["bn2_gamma"] = jnp.ones((1, DIM_HIDDEN_2), jnp.float32)
    p["bn2_beta"] = jnp.zeros((1, DIM_HIDDEN_2), jnp.float32)
    p["w2b"] = xavier_uniform(ks[6], (DIM_HIDDEN_2, DIM_HIDDEN_2), DIM_HIDDEN_2, DIM_HIDDEN_2)
    p["b2b"] = jnp.zeros((1, DIM_HIDDEN_2), jnp.float32)
    # Aggregation (num_heads = 1): w_1 (H1,1,1)->(H1,1); w_12 (1,H1,H2,1)->(H1,H2)
    p["agg_w1"] = xavier_uniform(ks[7], (DIM_HIDDEN_1, 1), DIM_HIDDEN_1, 1)
    p["agg_w2"] = xavier_uniform(ks[8], (DIM_HIDDEN_2, 1), DIM_HIDDEN_2, 1)
    p["agg_w12"] = xavier_uniform(ks[9], (DIM_HIDDEN_1, DIM_HIDDEN_2),
                                  DIM_HIDDEN_1, DIM_HIDDEN_2)
    p["agg_bias"] = jnp.ones((1, 1), jnp.float32)
    return p


# ---------------------------- pure-JAX reference -----------------------------
def reference_forward(emb_flat, p):
    gs1 = p["gate1_bias"] @ p["gate1_w"] + p["gate1_b"]
    gs2 = p["gate2_bias"] @ p["gate2_w"] + p["gate2_b"]
    out1 = 2.0 * jax.nn.sigmoid(gs1) * emb_flat
    out2 = 2.0 * jax.nn.sigmoid(gs2) * emb_flat

    def tower(x, wa, ba, g, b2, wb, bb):
        h = x @ wa + ba
        mean = jnp.mean(h, axis=0, keepdims=True)
        var = jnp.mean((h - mean) ** 2, axis=0, keepdims=True)
        h = (h - mean) / jnp.sqrt(var + BN_EPS) * g + b2
        h = jnp.maximum(h, 0.0)
        return h @ wb + bb

    lat1 = tower(out1, p["w1a"], p["b1a"], p["bn1_gamma"], p["bn1_beta"], p["w1b"], p["b1b"])
    lat2 = tower(out2, p["w2a"], p["b2a"], p["bn2_gamma"], p["bn2_beta"], p["w2b"], p["b2b"])
    first = lat1 @ p["agg_w1"] + lat2 @ p["agg_w2"]
    second = jnp.sum((lat1 @ p["agg_w12"]) * lat2, axis=-1, keepdims=True)
    return jax.nn.sigmoid(first + second + p["agg_bias"])


# ---------------------------------- main --------------------------------------
if __name__ == "__main__":
    key = jax.random.PRNGKey(0)
    pkey, dkey = jax.random.split(key)
    params = init_params(pkey)

    # integer categorical inputs: (B, DIM_INPUT)
    tokens = jax.random.randint(dkey, (B, DIM_INPUT), 0, NUM_EMBEDDING, jnp.int32)

    # embedding lookup + flatten (glue, plain JAX; integer gather kept outside
    # the Pallas kernel)
    emb = params["emb_table"][tokens]                      # (B, DIM_INPUT, DIM_EMBEDDING)
    emb_flat = emb.reshape(B, DIM_FEATURE).astype(jnp.float32)

    # parameter-only folds (would be cached in a real serving path)
    wa, wb, wbil, slab = prepare_kernel_params(params)

    out = finalmlp_forward(emb_flat, wa, wb, wbil, slab)
    out = jax.block_until_ready(out)

    ref = reference_forward(emb_flat, params)
    assert out.shape == (B, 1)
    assert jnp.all(jnp.isfinite(out))
    assert jnp.allclose(out, ref, atol=3e-5, rtol=3e-5), (out, ref)

    print("KERNEL_OK")
</pallas_src>

<mosaic_0001>
module attributes {stable_mosaic.version = 11 : i64} {
  func.func @finalmlp_kernel(%arg0: memref<8x128xf32, #tpu.memory_space<vmem>>, %arg1: memref<128x128xf32, #tpu.memory_space<vmem>>, %arg2: memref<128x128xf32, #tpu.memory_space<vmem>>, %arg3: memref<128x128xf32, #tpu.memory_space<vmem>>, %arg4: memref<8x128xf32, #tpu.memory_space<vmem>>, %arg5: memref<8x1xf32, #tpu.memory_space<vmem>>) attributes {dimension_semantics = [], scalar_prefetch = 0 : i64, scratch_operands = 0 : i64, tpu.core_type = #tpu.core_type<tc>} {
    %c0 = arith.constant 0 : index
    %c0_0 = arith.constant 0 : index
    %0 = vector.load %arg0[%c0, %c0_0] : memref<8x128xf32, #tpu.memory_space<vmem>>, vector<8x128xf32>
    %c0_1 = arith.constant 0 : index
    %c0_2 = arith.constant 0 : index
    %1 = vector.load %arg1[%c0_1, %c0_2] : memref<128x128xf32, #tpu.memory_space<vmem>>, vector<128x128xf32>
    %cst = arith.constant dense<0.000000e+00> : vector<8x128xf32>
    %2 = tpu.matmul %0, %1, %cst {dimension_numbers = #tpu.dot_dimension_numbers<[1], [0], [0], [1], [0, 0, 1, 1], [], []>} : vector<8x128xf32>, vector<128x128xf32>, vector<8x128xf32> -> vector<8x128xf32>
    %c0_3 = arith.constant 0 : index
    %c0_4 = arith.constant 0 : index
    %3 = vector.load %arg4[%c0_3, %c0_4] : memref<8x128xf32, #tpu.memory_space<vmem>>, vector<1x128xf32>
    %4 = vector.broadcast %3 : vector<1x128xf32> to vector<8x128xf32>
    %5 = arith.addf %2, %4 : vector<8x128xf32>
    %cst_5 = arith.constant dense<0.000000e+00> : vector<128xf32>
    %6 = vector.multi_reduction <add>, %5, %cst_5 [0] : vector<8x128xf32> to vector<128xf32>
    %7 = vector.shape_cast %6 : vector<128xf32> to vector<1x128xf32>
    %cst_6 = arith.constant 8.000000e+00 : f32
    %8 = vector.broadcast %cst_6 : f32 to vector<1x128xf32>
    %9 = arith.divf %7, %8 : vector<1x128xf32>
    %10 = vector.broadcast %9 : vector<1x128xf32> to vector<8x128xf32>
    %11 = arith.subf %5, %10 : vector<8x128xf32>
    %12 = arith.mulf %11, %11 : vector<8x128xf32>
    %cst_7 = arith.constant dense<0.000000e+00> : vector<128xf32>
    %13 = vector.multi_reduction <add>, %12, %cst_7 [0] : vector<8x128xf32> to vector<128xf32>
    %14 = vector.shape_cast %13 : vector<128xf32> to vector<1x128xf32>
    %cst_8 = arith.constant 8.000000e+00 : f32
    %15 = vector.broadcast %cst_8 : f32 to vector<1x128xf32>
    %16 = arith.divf %14, %15 : vector<1x128xf32>
    %17 = vector.broadcast %9 : vector<1x128xf32> to vector<8x128xf32>
    %18 = arith.subf %5, %17 : vector<8x128xf32>
    %cst_9 = arith.constant 9.99999974E-6 : f32
    %19 = vector.broadcast %cst_9 : f32 to vector<1x128xf32>
    %20 = arith.addf %16, %19 : vector<1x128xf32>
    %21 = math.rsqrt %20 : vector<1x128xf32>
    %22 = vector.broadcast %21 : vector<1x128xf32> to vector<8x128xf32>
    %23 = arith.mulf %18, %22 : vector<8x128xf32>
    %c1 = arith.constant 1 : index
    %c0_10 = arith.constant 0 : index
    %24 = vector.load %arg4[%c1, %c0_10] : memref<8x128xf32, #tpu.memory_space<vmem>>, vector<1x128xf32>
    %25 = vector.broadcast %24 : vector<1x128xf32> to vector<8x128xf32>
    %26 = arith.mulf %23, %25 : vector<8x128xf32>
    %c2 = arith.constant 2 : index
    %c0_11 = arith.constant 0 : index
    %27 = vector.load %arg4[%c2, %c0_11] : memref<8x128xf32, #tpu.memory_space<vmem>>, vector<1x128xf32>
    %28 = vector.broadcast %27 : vector<1x128xf32> to vector<8x128xf32>
    %29 = arith.addf %26, %28 : vector<8x128xf32>
    %cst_12 = arith.constant 0.000000e+00 : f32
    %30 = vector.broadcast %cst_12 : f32 to vector<8x128xf32>
    %31 = arith.maximumf %29, %30 : vector<8x128xf32>
    %c0_13 = arith.constant 0 : index
    %c0_14 = arith.constant 0 : index
    %32 = vector.load %arg2[%c0_13, %c0_14] : memref<128x128xf32, #tpu.memory_space<vmem>>, vector<128x128xf32>
    %cst_15 = arith.constant dense<0.000000e+00> : vector<8x128xf32>
    %33 = tpu.matmul %31, %32, %cst_15 {dimension_numbers = #tpu.dot_dimension_numbers<[1], [0], [0], [1], [0, 0, 1, 1], [], []>} : vector<8x128xf32>, vector<128x128xf32>, vector<8x128xf32> -> vector<8x128xf32>
    %c3 = arith.constant 3 : index
    %c0_16 = arith.constant 0 : index
    %34 = vector.load %arg4[%c3, %c0_16] : memref<8x128xf32, #tpu.memory_space<vmem>>, vector<1x128xf32>
    %35 = vector.broadcast %34 : vector<1x128xf32> to vector<8x128xf32>
    %36 = arith.addf %33, %35 : vector<8x128xf32>
    %c0_17 = arith.constant 0 : index
    %c0_18 = arith.constant 0 : index
    %37 = vector.load %arg3[%c0_17, %c0_18] : memref<128x128xf32, #tpu.memory_space<vmem>>, vector<128x128xf32>
    %cst_19 = arith.constant dense<0.000000e+00> : vector<8x128xf32>
    %38 = tpu.matmul %36, %37, %cst_19 {dimension_numbers = #tpu.dot_dimension_numbers<[1], [0], [0], [1], [0, 0, 1, 1], [], []>} : vector<8x128xf32>, vector<128x128xf32>, vector<8x128xf32> -> vector<8x128xf32>
    %c4 = arith.constant 4 : index
    %c0_20 = arith.constant 0 : index
    %39 = vector.load %arg4[%c4, %c0_20] : memref<8x128xf32, #tpu.memory_space<vmem>>, vector<1x128xf32>
    %40 = vector.broadcast %39 : vector<1x128xf32> to vector<8x128xf32>
    %41 = arith.addf %38, %40 : vector<8x128xf32>
    %42 = arith.mulf %41, %36 : vector<8x128xf32>
    %cst_21 = arith.constant dense<0.000000e+00> : vector<8xf32>
    %43 = vector.multi_reduction <add>, %42, %cst_21 [1] : vector<8x128xf32> to vector<8xf32>
    %44 = vector.shape_cast %43 : vector<8xf32> to vector<8x1xf32>
    %c5 = arith.constant 5 : index
    %c0_22 = arith.constant 0 : index
    %45 = vector.load %arg4[%c5, %c0_22] : memref<8x128xf32, #tpu.memory_space<vmem>>, vector<1x1xf32>
    %46 = vector.broadcast %45 : vector<1x1xf32> to vector<8x1xf32>
    %47 = arith.addf %44, %46 : vector<8x1xf32>
    %48 = arith.negf %47 : vector<8x1xf32>
    %49 = math.exp %48 : vector<8x1xf32>
    %cst_23 = arith.constant 1.000000e+00 : f32
    %50 = vector.broadcast %cst_23 : f32 to vector<8x1xf32>
    %51 = arith.addf %50, %49 : vector<8x1xf32>
    %52 = arith.divf %50, %51 : vector<8x1xf32>
    %c0_24 = arith.constant 0 : index
    %c0_25 = arith.constant 0 : index
    %53 = vector.load %arg5[%c0_24, %c0_25] : memref<8x1xf32, #tpu.memory_space<vmem>>, vector<8x1xf32>
    tpu.vector_store %arg5[%c0_24, %c0_25], %52 {strides = array<i32>} : memref<8x1xf32, #tpu.memory_space<vmem>>, vector<8x1xf32>,
    return
  }
}

</mosaic_0001>

<llo_original>
// kernel: tpu_custom_call.1
$region0: #{tpu_custom_call.1}
  #allocation0 [shape = 'u32[]', space=smem, size = 0x4, offset = 0x4, fixed_abs, tag = 'smem constant byte address 0x4 - core index']
  #allocation1 [shape = 'u32[144,128]{1,0:T(1,128)}', space=vmem, size = 0x12000, scoped, tag = 'internal scratch']
  %s0 = inlined_call_operand.hbm [shape: f32[8,128], index: 0, kind: input, shape index: {}]
  %s1 = inlined_call_operand.hbm [shape: f32[128,128], index: 1, kind: input, shape index: {}]
  %s2 = inlined_call_operand.hbm [shape: f32[128,128], index: 2, kind: input, shape index: {}]
  %s3 = inlined_call_operand.hbm [shape: f32[128,128], index: 3, kind: input, shape index: {}]
  %s4 = inlined_call_operand.vmem [shape: f32[8,128], index: 4, kind: input, shape index: {}]
  %s5 = inlined_call_operand.vmem [shape: f32[8,1], index: 5, kind: output, shape index: {}]
  %s6 = sld [smem:[#allocation0]]
  $region46: #{tpu_custom_call.1} parent=0
    _
  %s8 = ssub.s32 1, %s6
  %s9 = scalar_select 0, %s8, %s6
  $region1: #{tpu_custom_call.1} parent=0
    #allocation2 [shape = 'u8[4096]{0}', space=vmem, size = 0x1000, scoped, tag = 'input window, operand 0, single buffered']
    #allocation3 [shape = 's32[1]{0}', space=sflag, size = 0x4, scoped, tag = 'scoped memory for tpu_custom_call.1']
    #allocation4 [shape = 'u8[65536]{0}', space=vmem, size = 0x10000, scoped, tag = 'input window, operand 1, single buffered']
    #allocation5 [shape = 's32[1]{0}', space=sflag, size = 0x4, scoped, tag = 'scoped memory for tpu_custom_call.1']
    #allocation6 [shape = 'u8[65536]{0}', space=vmem, size = 0x10000, scoped, tag = 'input window, operand 2, single buffered']
    #allocation7 [shape = 'u8[65536]{0}', space=vmem, size = 0x10000, scoped, tag = 'input window, operand 3, single buffered']
    #allocation8 [shape = 's32[1]{0}', space=sflag, size = 0x4, scoped, tag = 'scoped memory for tpu_custom_call.1']
    %10 = vsyncpa [#allocation3], 0
    %11 = vsyncpa [#allocation5], 0
    %12 = vsyncpa [#allocation8], 0
    // Predicated region
    $region2: #{tpu_custom_call.1} parent=1 // pred_check
      _
    $region3: #{tpu_custom_call.1} parent=1 // pred_check_branch
      %14 = sbr.rel (0) target = $region5
    $region4: #{tpu_custom_call.1} parent=1 // pred_region
      %s16 = ssub.s32 128, 128
      %17 = vsyncadd [#allocation3], %s16
      %s19 = sshll.u32 [#allocation2], 4
      %s20 = int_to_ptr.vmem [resolvable:$true] %s19
      %22 = dma.hbm_to_vmem [thread:$0]  %s0, 128, %s20, [#allocation3]
    $region5: #{tpu_custom_call.1} parent=1 // pred_fallthru
      _
    // Predicated region
    $region6: #{tpu_custom_call.1} parent=1 // pred_check
      _
    $region7: #{tpu_custom_call.1} parent=1 // pred_check_branch
      %24 = sbr.rel (0) target = $region9
    $region8: #{tpu_custom_call.1} parent=1 // pred_region
      %s26 = ssub.s32 2048, 2048
      %27 = vsyncadd [#allocation5], %s26
      %s28 = sshll.u32 [#allocation4], 4
      %s29 = int_to_ptr.vmem [resolvable:$true] %s28
      %34 = dma.hbm_to_vmem [thread:$0]  %s1, 2048, %s29, [#allocation5], 128, 128, 8
    $region9: #{tpu_custom_call.1} parent=1 // pred_fallthru
      _
    // Predicated region
    $region10: #{tpu_custom_call.1} parent=1 // pred_check
      _
    $region11: #{tpu_custom_call.1} parent=1 // pred_check_branch
      %36 = sbr.rel (0) target = $region13
    $region12: #{tpu_custom_call.1} parent=1 // pred_region
      %s38 = ssub.s32 2048, 2048
      %39 = vsyncadd [#allocation5], %s38
      %s40 = sshll.u32 [#allocation6], 4
      %s41 = int_to_ptr.vmem [resolvable:$true] %s40
      %46 = dma.hbm_to_vmem [thread:$0]  %s2, 2048, %s41, [#allocation5], 128, 128, 8
    $region13: #{tpu_custom_call.1} parent=1 // pred_fallthru
      _
    // Predicated region
    $region14: #{tpu_custom_call.1} parent=1 // pred_check
      _
    $region15: #{tpu_custom_call.1} parent=1 // pred_check_branch
      %48 = sbr.rel (0) target = $region17
    $region16: #{tpu_custom_call.1} parent=1 // pred_region
      %s50 = ssub.s32 2048, 2048
      %51 = vsyncadd [#allocation8], %s50
      %s52 = sshll.u32 [#allocation7], 4
      %s53 = int_to_ptr.vmem [resolvable:$true] %s52
      %58 = dma.hbm_to_vmem [thread:$0]  %s3, 2048, %s53, [#allocation8], 128, 128, 8
    $region17: #{tpu_custom_call.1} parent=1 // pred_fallthru
      _
    // Predicated region
    $region18: #{tpu_custom_call.1} parent=1 // pred_check
      _
    $region19: #{tpu_custom_call.1} parent=1 // pred_check_branch
      %60 = sbr.rel (0) target = $region21
    $region20: #{tpu_custom_call.1} parent=1 // pred_region
      _
    $region21: #{tpu_custom_call.1} parent=1 // pred_fallthru
      _
    // Predicated region
    $region22: #{tpu_custom_call.1} parent=1 // pred_check
      _
    $region23: #{tpu_custom_call.1} parent=1 // pred_check_branch
      %62 = sbr.rel (0) target = $region25
    $region24: #{tpu_custom_call.1} parent=1 // pred_region
      %63 = dma.done [#allocation3], 128
    $region25: #{tpu_custom_call.1} parent=1 // pred_fallthru
      _
    // Predicated region
    $region26: #{tpu_custom_call.1} parent=1 // pred_check
      _
    $region27: #{tpu_custom_call.1} parent=1 // pred_check_branch
      %65 = sbr.rel (0) target = $region29
    $region28: #{tpu_custom_call.1} parent=1 // pred_region
      %66 = dma.done [#allocation5], 2048
    $region29: #{tpu_custom_call.1} parent=1 // pred_fallthru
      _
    // Predicated region
    $region30: #{tpu_custom_call.1} parent=1 // pred_check
      _
    $region31: #{tpu_custom_call.1} parent=1 // pred_check_branch
      %68 = sbr.rel (0) target = $region33
    $region32: #{tpu_custom_call.1} parent=1 // pred_region
      %69 = dma.done [#allocation5], 2048
    $region33: #{tpu_custom_call.1} parent=1 // pred_fallthru
      _
    // Predicated region
    $region34: #{tpu_custom_call.1} parent=1 // pred_check
      _
    $region35: #{tpu_custom_call.1} parent=1 // pred_check_branch
      %71 = sbr.rel (0) target = $region37
    $region36: #{tpu_custom_call.1} parent=1 // pred_region
      %72 = dma.done [#allocation8], 2048
    $region37: #{tpu_custom_call.1} parent=1 // pred_fallthru
      _
    %v73 = vld [vmem:[#allocation2] sm:$0xff]
    %v74 = vld [vmem:[#allocation4] sm:$0xff]
    %v75 = vld [vmem:[#allocation4 + $0x8] sm:$0xff]
    %v76 = vld [vmem:[#allocation4 + $0x10] sm:$0xff]
    %v77 = vld [vmem:[#allocation4 + $0x18] sm:$0xff]
    %v78 = vld [vmem:[#allocation4 + $0x20] sm:$0xff]
    %v79 = vld [vmem:[#allocation4 + $0x28] sm:$0xff]
    %v80 = vld [vmem:[#allocation4 + $0x30] sm:$0xff]
    %v81 = vld [vmem:[#allocation4 + $0x38] sm:$0xff]
    %v82 = vld [vmem:[#allocation4 + $0x40] sm:$0xff]
    %v83 = vld [vmem:[#allocation4 + $0x48] sm:$0xff]
    %v84 = vld [vmem:[#allocation4 + $0x50] sm:$0xff]
    %v85 = vld [vmem:[#allocation4 + $0x58] sm:$0xff]
    %v86 = vld [vmem:[#allocation4 + $0x60] sm:$0xff]
    %v87 = vld [vmem:[#allocation4 + $0x68] sm:$0xff]
    %v88 = vld [vmem:[#allocation4 + $0x70] sm:$0xff]
    %v89 = vld [vmem:[#allocation4 + $0x78] sm:$0xff]
    %v90 = vld [vmem:[%s4] sm:$0x1]
    %v91 = vlaneseq
    %v92 = vshrl.u32 %v91, 7
    %v93 = vsub.s32 0, %v92
    %v94 = vrot.slane %v90, %v93
    %95 = vmatprep.subr.mxu0 0.0
    %96 = vmatpush1.msra.mxu0 %v74
    %97 = vmatprep.subr.mxu0 0.0
    %98 = vmatpush1.msra.mxu0 %v75
    %99 = vmatprep.subr.mxu0 0.0
    %100 = vmatpush1.msra.mxu0 %v76
    %101 = vmatprep.subr.mxu0 0.0
    %102 = vmatpush1.msra.mxu0 %v77
    %103 = vmatprep.subr.mxu0 0.0
    %104 = vmatpush1.msra.mxu0 %v78
    %105 = vmatprep.subr.mxu0 0.0
    %106 = vmatpush1.msra.mxu0 %v79
    %107 = vmatprep.subr.mxu0 0.0
    %108 = vmatpush1.msra.mxu0 %v80
    %109 = vmatprep.subr.mxu0 0.0
    %110 = vmatpush1.msra.mxu0 %v81
    %111 = vmatprep.subr.mxu0 0.0
    %112 = vmatpush1.msra.mxu0 %v82
    %113 = vmatprep.subr.mxu0 0.0
    %114 = vmatpush1.msra.mxu0 %v83
    %115 = vmatprep.subr.mxu0 0.0
    %116 = vmatpush1.msra.mxu0 %v84
    %117 = vmatprep.subr.mxu0 0.0
    %118 = vmatpush1.msra.mxu0 %v85
    %119 = vmatprep.subr.mxu0 0.0
    %120 = vmatpush1.msra.mxu0 %v86
    %121 = vmatprep.subr.mxu0 0.0
    %122 = vmatpush1.msra.mxu0 %v87
    %123 = vmatprep.subr.mxu0 0.0
    %124 = vmatpush1.msra.mxu0 %v88
    %125 = vmatprep.subr.mxu0 0.0
    %126 = vmatpush1.msra.mxu0 %v89
    %127 = vmatprep.subr.mxu0 0.0
    %128 = vmatpush1.msra.mxu0 0.0
    %129 = vmatprep.subr.mxu0 0.0
    %130 = vmatpush1.msra.mxu0 0.0
    %131 = vmatprep.subr.mxu0 0.0
    %132 = vmatpush1.msra.mxu0 0.0
    %133 = vmatprep.subr.mxu0 0.0
    %134 = vmatpush1.msra.mxu0 0.0
    %135 = vmatprep.subr.mxu0 0.0
    %136 = vmatpush1.msra.mxu0 0.0
    %137 = vmatprep.subr.mxu0 0.0
    %138 = vmatpush1.msra.mxu0 0.0
    %139 = vmatprep.subr.mxu0 0.0
    %140 = vmatpush1.msra.mxu0 0.0
    %141 = vmatprep.subr.mxu0 0.0
    %142 = vmatpush1.msra.mxu0 0.0
    %143 = vmatprep.subr.mxu0 0.0
    %144 = vmatpush1.msra.mxu0 0.0
    %145 = vmatprep.subr.mxu0 0.0
    %146 = vmatpush1.msra.mxu0 0.0
    %147 = vmatprep.subr.mxu0 0.0
    %148 = vmatpush1.msra.mxu0 0.0
    %149 = vmatprep.subr.mxu0 0.0
    %150 = vmatpush1.msra.mxu0 0.0
    %151 = vmatprep.subr.mxu0 0.0
    %152 = vmatpush1.msra.mxu0 0.0
    %153 = vmatprep.subr.mxu0 0.0
    %154 = vmatpush1.msra.mxu0 0.0
    %155 = vmatprep.subr.mxu0 0.0
    %156 = vmatpush1.msra.mxu0 0.0
    %157 = vmatprep.subr.mxu0 0.0
    %158 = vmatpush1.msra.mxu0 0.0
    %159 = vmatprep.mubr.f32.mxu0 0.0
    %160 = vmatmul.mubr.f32.gmra.mrb[0].mxu0 %v73
    %v161 = vpop.f32.mrb[0].mxu0
    %v162 = vadd.f32 %v94, %v161
    %v163 = vpop.f32.mrb[0].mxu0
    %164 = vdwg.mxu0
    %v165 = vrot.slane %v162, 4
    %v166 = vadd.f32 %v162, %v165
    %v167 = vrot.slane %v166, 2
    %v168 = vadd.f32 %v166, %v167
    %v169 = vrot.slane %v168, 1
    %v170 = vadd.f32 %v168, %v169
    %v171 = vrcp.pop 8.0
    %v172 = vmul.f32 %v170, %v171
    %v173 = vsub.f32 %v162, %v172
    %v174 = vmul.f32 %v173, %v173
    %v175 = vrot.slane %v174, 4
    %v176 = vadd.f32 %v174, %v175
    %v177 = vrot.slane %v176, 2
    %v178 = vadd.f32 %v176, %v177
    %v179 = vrot.slane %v178, 1
    %v180 = vadd.f32 %v178, %v179
    %v181 = vmul.f32 %v180, %v171
    %v182 = vadd.f32 %v181, 1e-05
    %v183 = vrsqrt.pop %v182
    %v184 = vmul.f32 %v173, %v183
    %v185 = vld [vmem:[%s4 + $0x1] sm:$0x1]
    %v186 = vlaneseq
    %v187 = vshrl.u32 %v186, 7
    %v188 = vsub.s32 0, %v187
    %v189 = vrot.slane %v185, %v188
    %v190 = vmul.f32 %v184, %v189
    %v191 = vld [vmem:[%s4 + $0x2] sm:$0x1]
    %v192 = vlaneseq
    %v193 = vshrl.u32 %v192, 7
    %v194 = vsub.s32 0, %v193
    %v195 = vrot.slane %v191, %v194
    %v196 = vadd.f32 %v190, %v195
    %v197 = vmax.f32 %v196, 0.0
    %v198 = vld [vmem:[#allocation6] sm:$0xff]
    %v199 = vld [vmem:[#allocation6 + $0x8] sm:$0xff]
    %v200 = vld [vmem:[#allocation6 + $0x10] sm:$0xff]
    %v201 = vld [vmem:[#allocation6 + $0x18] sm:$0xff]
    %v202 = vld [vmem:[#allocation6 + $0x20] sm:$0xff]
    %v203 = vld [vmem:[#allocation6 + $0x28] sm:$0xff]
    %v204 = vld [vmem:[#allocation6 + $0x30] sm:$0xff]
    %v205 = vld [vmem:[#allocation6 + $0x38] sm:$0xff]
    %v206 = vld [vmem:[#allocation6 + $0x40] sm:$0xff]
    %v207 = vld [vmem:[#allocation6 + $0x48] sm:$0xff]
    %v208 = vld [vmem:[#allocation6 + $0x50] sm:$0xff]
    %v209 = vld [vmem:[#allocation6 + $0x58] sm:$0xff]
    %v210 = vld [vmem:[#allocation6 + $0x60] sm:$0xff]
    %v211 = vld [vmem:[#allocation6 + $0x68] sm:$0xff]
    %v212 = vld [vmem:[#allocation6 + $0x70] sm:$0xff]
    %v213 = vld [vmem:[#allocation6 + $0x78] sm:$0xff]
    %v214 = vld [vmem:[%s4 + $0x3] sm:$0x1]
    %v215 = vlaneseq
    %v216 = vshrl.u32 %v215, 7
    %v217 = vsub.s32 0, %v216
    %v218 = vrot.slane %v214, %v217
    %219 = vmatprep.subr.mxu0 0.0
    %220 = vmatpush1.msra.mxu0 %v198
    %221 = vmatprep.subr.mxu0 0.0
    %222 = vmatpush1.msra.mxu0 %v199
    %223 = vmatprep.subr.mxu0 0.0
    %224 = vmatpush1.msra.mxu0 %v200
    %225 = vmatprep.subr.mxu0 0.0
    %226 = vmatpush1.msra.mxu0 %v201
    %227 = vmatprep.subr.mxu0 0.0
    %228 = vmatpush1.msra.mxu0 %v202
    %229 = vmatprep.subr.mxu0 0.0
    %230 = vmatpush1.msra.mxu0 %v203
    %231 = vmatprep.subr.mxu0 0.0
    %232 = vmatpush1.msra.mxu0 %v204
    %233 = vmatprep.subr.mxu0 0.0
    %234 = vmatpush1.msra.mxu0 %v205
    %235 = vmatprep.subr.mxu0 0.0
    %236 = vmatpush1.msra.mxu0 %v206
    %237 = vmatprep.subr.mxu0 0.0
    %238 = vmatpush1.msra.mxu0 %v207
    %239 = vmatprep.subr.mxu0 0.0
    %240 = vmatpush1.msra.mxu0 %v208
    %241 = vmatprep.subr.mxu0 0.0
    %242 = vmatpush1.msra.mxu0 %v209
    %243 = vmatprep.subr.mxu0 0.0
    %244 = vmatpush1.msra.mxu0 %v210
    %245 = vmatprep.subr.mxu0 0.0
    %246 = vmatpush1.msra.mxu0 %v211
    %247 = vmatprep.subr.mxu0 0.0
    %248 = vmatpush1.msra.mxu0 %v212
    %249 = vmatprep.subr.mxu0 0.0
    %250 = vmatpush1.msra.mxu0 %v213
    %251 = vmatprep.subr.mxu0 0.0
    %252 = vmatpush1.msra.mxu0 0.0
    %253 = vmatprep.subr.mxu0 0.0
    %254 = vmatpush1.msra.mxu0 0.0
    %255 = vmatprep.subr.mxu0 0.0
    %256 = vmatpush1.msra.mxu0 0.0
    %257 = vmatprep.subr.mxu0 0.0
    %258 = vmatpush1.msra.mxu0 0.0
    %259 = vmatprep.subr.mxu0 0.0
    %260 = vmatpush1.msra.mxu0 0.0
    %261 = vmatprep.subr.mxu0 0.0
    %262 = vmatpush1.msra.mxu0 0.0
    %263 = vmatprep.subr.mxu0 0.0
    %264 = vmatpush1.msra.mxu0 0.0
    %265 = vmatprep.subr.mxu0 0.0
    %266 = vmatpush1.msra.mxu0 0.0
    %267 = vmatprep.subr.mxu0 0.0
    %268 = vmatpush1.msra.mxu0 0.0
    %269 = vmatprep.subr.mxu0 0.0
    %270 = vmatpush1.msra.mxu0 0.0
    %271 = vmatprep.subr.mxu0 0.0
    %272 = vmatpush1.msra.mxu0 0.0
    %273 = vmatprep.subr.mxu0 0.0
    %274 = vmatpush1.msra.mxu0 0.0
    %275 = vmatprep.subr.mxu0 0.0
    %276 = vmatpush1.msra.mxu0 0.0
    %277 = vmatprep.subr.mxu0 0.0
    %278 = vmatpush1.msra.mxu0 0.0
    %279 = vmatprep.subr.mxu0 0.0
    %280 = vmatpush1.msra.mxu0 0.0
    %281 = vmatprep.subr.mxu0 0.0
    %282 = vmatpush1.msra.mxu0 0.0
    %283 = vmatprep.mubr.f32.mxu0 0.0
    %284 = vmatmul.mubr.f32.gmra.mrb[0].mxu0 %v197
    %v285 = vpop.f32.mrb[0].mxu0
    %v286 = vadd.f32 %v218, %v285
    %v287 = vpop.f32.mrb[0].mxu0
    %288 = vdwg.mxu0
    %v289 = vld [vmem:[#allocation7] sm:$0xff]
    %v290 = vld [vmem:[#allocation7 + $0x8] sm:$0xff]
    %v291 = vld [vmem:[#allocation7 + $0x10] sm:$0xff]
    %v292 = vld [vmem:[#allocation7 + $0x18] sm:$0xff]
    %v293 = vld [vmem:[#allocation7 + $0x20] sm:$0xff]
    %v294 = vld [vmem:[#allocation7 + $0x28] sm:$0xff]
    %v295 = vld [vmem:[#allocation7 + $0x30] sm:$0xff]
    %v296 = vld [vmem:[#allocation7 + $0x38] sm:$0xff]
    %v297 = vld [vmem:[#allocation7 + $0x40] sm:$0xff]
    %v298 = vld [vmem:[#allocation7 + $0x48] sm:$0xff]
    %v299 = vld [vmem:[#allocation7 + $0x50] sm:$0xff]
    %v300 = vld [vmem:[#allocation7 + $0x58] sm:$0xff]
    %v301 = vld [vmem:[#allocation7 + $0x60] sm:$0xff]
    %v302 = vld [vmem:[#allocation7 + $0x68] sm:$0xff]
    %v303 = vld [vmem:[#allocation7 + $0x70] sm:$0xff]
    %v304 = vld [vmem:[#allocation7 + $0x78] sm:$0xff]
    %v305 = vld [vmem:[%s4 + $0x4] sm:$0x1]
    %v306 = vlaneseq
    %v307 = vshrl.u32 %v306, 7
    %v308 = vsub.s32 0, %v307
    %v309 = vrot.slane %v305, %v308
    %310 = vmatprep.subr.mxu0 0.0
    %311 = vmatpush1.msra.mxu0 %v289
    %312 = vmatprep.subr.mxu0 0.0
    %313 = vmatpush1.msra.mxu0 %v290
    %314 = vmatprep.subr.mxu0 0.0
    %315 = vmatpush1.msra.mxu0 %v291
    %316 = vmatprep.subr.mxu0 0.0
    %317 = vmatpush1.msra.mxu0 %v292
    %318 = vmatprep.subr.mxu0 0.0
    %319 = vmatpush1.msra.mxu0 %v293
    %320 = vmatprep.subr.mxu0 0.0
    %321 = vmatpush1.msra.mxu0 %v294
    %322 = vmatprep.subr.mxu0 0.0
    %323 = vmatpush1.msra.mxu0 %v295
    %324 = vmatprep.subr.mxu0 0.0
    %325 = vmatpush1.msra.mxu0 %v296
    %326 = vmatprep.subr.mxu0 0.0
    %327 = vmatpush1.msra.mxu0 %v297
    %328 = vmatprep.subr.mxu0 0.0
    %329 = vmatpush1.msra.mxu0 %v298
    %330 = vmatprep.subr.mxu0 0.0
    %331 = vmatpush1.msra.mxu0 %v299
    %332 = vmatprep.subr.mxu0 0.0
    %333 = vmatpush1.msra.mxu0 %v300
    %334 = vmatprep.subr.mxu0 0.0
    %335 = vmatpush1.msra.mxu0 %v301
    %336 = vmatprep.subr.mxu0 0.0
    %337 = vmatpush1.msra.mxu0 %v302
    %338 = vmatprep.subr.mxu0 0.0
    %339 = vmatpush1.msra.mxu0 %v303
    %340 = vmatprep.subr.mxu0 0.0
    %341 = vmatpush1.msra.mxu0 %v304
    %342 = vmatprep.subr.mxu0 0.0
    %343 = vmatpush1.msra.mxu0 0.0
    %344 = vmatprep.subr.mxu0 0.0
    %345 = vmatpush1.msra.mxu0 0.0
    %346 = vmatprep.subr.mxu0 0.0
    %347 = vmatpush1.msra.mxu0 0.0
    %348 = vmatprep.subr.mxu0 0.0
    %349 = vmatpush1.msra.mxu0 0.0
    %350 = vmatprep.subr.mxu0 0.0
    %351 = vmatpush1.msra.mxu0 0.0
    %352 = vmatprep.subr.mxu0 0.0
    %353 = vmatpush1.msra.mxu0 0.0
    %354 = vmatprep.subr.mxu0 0.0
    %355 = vmatpush1.msra.mxu0 0.0
    %356 = vmatprep.subr.mxu0 0.0
    %357 = vmatpush1.msra.mxu0 0.0
    %358 = vmatprep.subr.mxu0 0.0
    %359 = vmatpush1.msra.mxu0 0.0
    %360 = vmatprep.subr.mxu0 0.0
    %361 = vmatpush1.msra.mxu0 0.0
    %362 = vmatprep.subr.mxu0 0.0
    %363 = vmatpush1.msra.mxu0 0.0
    %364 = vmatprep.subr.mxu0 0.0
    %365 = vmatpush1.msra.mxu0 0.0
    %366 = vmatprep.subr.mxu0 0.0
    %367 = vmatpush1.msra.mxu0 0.0
    %368 = vmatprep.subr.mxu0 0.0
    %369 = vmatpush1.msra.mxu0 0.0
    %370 = vmatprep.subr.mxu0 0.0
    %371 = vmatpush1.msra.mxu0 0.0
    %372 = vmatprep.subr.mxu0 0.0
    %373 = vmatpush1.msra.mxu0 0.0
    %374 = vmatprep.mubr.f32.mxu0 0.0
    %375 = vmatmul.mubr.f32.gmra.mrb[0].mxu0 %v286
    %v376 = vpop.f32.mrb[0].mxu0
    %v377 = vadd.f32 %v309, %v376
    %v378 = vpop.f32.mrb[0].mxu0
    %379 = vdwg.mxu0
    %v380 = vmul.f32 %v377, %v286
    %381 = vadd.xlane.f32.xlu0 %v380
    %v382 = vpop.xlane.xlu0 %381
    %v383 = vld [vmem:[%s4 + $0x5] sm:$0x1]
    %v384 = vlaneseq
    %v385 = vshrl.u32 %v384, 7
    %v386 = vsub.s32 0, %v385
    %v387 = vrot.slane %v383, %v386
    %v388 = vadd.f32 %v382, %v387
    %v389 = vxor.u32 %v388, 2147483648
    %v390 = vmul.f32 %v389, 1.442695
    %v391 = vpow.pop %v390
    %v392 = vadd.f32 %v391, 1.0
    %v393 = vrcp.pop %v392
    %v394 = vmul.f32 1.0, %v393
    %vm395 = vcmask 7168
    %396 = vst.msk [vmem:[%s5] sm:$0xff] %vm395, %v394
    // Predicated region
    $region38: #{tpu_custom_call.1} parent=1 // pred_check
      _
    $region39: #{tpu_custom_call.1} parent=1 // pred_check_branch
      %398 = sbr.rel (0) target = $region41
    $region40: #{tpu_custom_call.1} parent=1 // pred_region
      _
    $region41: #{tpu_custom_call.1} parent=1 // pred_fallthru
      _
    // Predicated region
    $region42: #{tpu_custom_call.1} parent=1 // pred_check
      _
    $region43: #{tpu_custom_call.1} parent=1 // pred_check_branch
      %400 = sbr.rel (0) target = $region45
    $region44: #{tpu_custom_call.1} parent=1 // pred_region
      _
    $region45: #{tpu_custom_call.1} parent=1 // pred_fallthru
      _
    %401 = vsyncpa [#allocation3], 1
    %402 = vsyncpa [#allocation5], 1
    %403 = vsyncpa [#allocation8], 1

</llo_original>
